<compile_context>
chip_gen: v7x
topology: tpu7x:2x2x1
jax: 0.10.0
libtpu: 0.0.40
codegen_flags: <defaults>
</compile_context>

<pallas_src>
import functools

import jax
import jax.numpy as jnp
import numpy as np
from jax.experimental import pallas as pl
from jax.experimental.pallas import tpu as pltpu


_VMEM_LIMIT_BYTES = 48 * 1024 * 1024  # safe on v5e/v6e (128 MiB) and v7x (64 MiB)


def _cdiv(a, b):
    return -(-a // b)


def _round_up(a, b):
    return _cdiv(a, b) * b


def _sublane_multiple(dtype):
    # Minimum sublane tile per element width: f32 -> 8, bf16 -> 16, int8/fp8 -> 32.
    return {4: 8, 2: 16, 1: 32}.get(jnp.dtype(dtype).itemsize, 8)


# --------------------------------------------------------------------------- #
# Kernel
# --------------------------------------------------------------------------- #
def _mixmatch_kernel(xout_ref, xtgt_ref, uout_ref, utgt_ref, lx_ref, lu_ref,
                     acc_ref, *, bx, bu, tb, nt_x, nt_u, nt_per_core,
                     scale_x, scale_u):
    c = pl.program_id(0)                 # core / partial index ("parallel")
    j = pl.program_id(1)                 # tile index within this core ("arbitrary")
    t = c * nt_per_core + j              # global batch-tile index
    row_ids = t * tb + jax.lax.broadcasted_iota(jnp.int32, (tb, 1), 0)

    # Reset this core's accumulators at the start of its tile loop.
    @pl.when(j == 0)
    def _():
        acc_ref[0] = 0.0
        acc_ref[1] = 0.0

    # ----- labeled stream: sum over valid rows of sum_c(log_softmax(x) * xt) -- #
    @pl.when(t < nt_x)
    def _():
        mask = row_ids < bx                                        # (tb, 1)
        x = jnp.where(mask, xout_ref[...].astype(jnp.float32), 0.0)
        xt = jnp.where(mask, xtgt_ref[...].astype(jnp.float32), 0.0)
        z = x - jnp.max(x, axis=1, keepdims=True)
        lse = jnp.log(jnp.sum(jnp.exp(z), axis=1, keepdims=True))
        # masked rows: xt == 0 -> contribute exactly 0
        acc_ref[0] += scale_x * jnp.sum((z - lse) * xt)

    # ----- unlabeled stream: sum over valid rows of sum_c((softmax(u) - ut)^2) #
    @pl.when(t < nt_u)
    def _():
        mask = row_ids < bu
        u = jnp.where(mask, uout_ref[...].astype(jnp.float32), 0.0)
        ut = jnp.where(mask, utgt_ref[...].astype(jnp.float32), 0.0)
        ue = jnp.exp(u - jnp.max(u, axis=1, keepdims=True))
        inv_den = pl.reciprocal(jnp.sum(ue, axis=1, keepdims=True))  # exact
        diff = jnp.where(mask, ue * inv_den - ut, 0.0)  # padded rows would be 1/C
        acc_ref[1] += scale_u * jnp.sum(diff * diff)

    # ----- write this core's (already normalized) partial once, at the end --- #
    @pl.when(j == nt_per_core - 1)
    def _():
        lx_ref[...] = jnp.full(lx_ref.shape, acc_ref[0], jnp.float32)
        lu_ref[...] = jnp.full(lu_ref.shape, acc_ref[1], jnp.float32)


# --------------------------------------------------------------------------- #
# Wrapper
# --------------------------------------------------------------------------- #
def _choose_block_rows(bx, bu, cx, cu, dtypes):
    """Largest sublane-aligned batch tile whose working set fits the VMEM budget."""
    sub = max(_sublane_multiple(d) for d in dtypes)
    isz = [jnp.dtype(d).itemsize for d in dtypes]
    native_row = cx * (isz[0] + isz[1]) + cu * (isz[2] + isz[3])
    work_row = 4 * 3 * (cx + cu)          # ~3 f32 tile-sized temporaries per stream
    per_row = 2 * native_row + work_row   # double-buffered inputs + working set
    budget = _VMEM_LIMIT_BYTES // 2       # leave headroom for pipeline/scratch
    tb = max(sub, (budget // per_row) // sub * sub)
    tb = min(tb, _round_up(max(bx, bu), sub))
    return tb, sub


@functools.partial(jax.jit, static_argnames=("block_rows",))
def mixmatch_loss_pallas(xoutput, xtarget, uoutput, utarget, block_rows=None):
    """Returns (Lx, Lu) as f32 scalars."""
    bx, cx = xoutput.shape
    bu, cu = uoutput.shape
    dtypes = (xoutput.dtype, xtarget.dtype, uoutput.dtype, utarget.dtype)
    tb, sub = _choose_block_rows(bx, bu, cx, cu, dtypes)
    if block_rows is not None:            # test/override hook (must be sublane-aligned)
        tb = int(block_rows)

    nt_x = _cdiv(bx, tb)
    nt_u = _cdiv(bu, tb)
    nt = max(nt_x, nt_u)

    # If a large batch fits a single tile, split it so both TensorCores (v7x)
    # get grid steps; negligible overhead on single-TC v5e/v6e.
    if block_rows is None and nt == 1 and max(bx, bu) >= 512:
        tb = max(sub, _round_up(_cdiv(max(bx, bu), 2), sub))
        nt_x = _cdiv(bx, tb)
        nt_u = _cdiv(bu, tb)
        nt = max(nt_x, nt_u)

    nc = 2 if nt >= 2 else 1
    nt_per_core = _cdiv(nt, nc)

    def in_map(nt_s):
        # Clamp the shorter stream: repeated block index => no extra DMA, and
        # its compute is skipped in-kernel with pl.when.
        def imap(c, j):
            t = c * nt_per_core + j
            return (jnp.minimum(t, nt_s - 1), 0)
        return imap

    kernel = functools.partial(
        _mixmatch_kernel,
        bx=bx, bu=bu, tb=tb, nt_x=nt_x, nt_u=nt_u, nt_per_core=nt_per_core,
        scale_x=-1.0 / bx, scale_u=1.0 / (bu * cu))

    lx_parts, lu_parts = pl.pallas_call(
        kernel,
        out_shape=(
            jax.ShapeDtypeStruct((nc, 1, 1), jnp.float32),
            jax.ShapeDtypeStruct((nc, 1, 1), jnp.float32),
        ),
        grid=(nc, nt_per_core),
        in_specs=[
            pl.BlockSpec((tb, cx), in_map(nt_x)),
            pl.BlockSpec((tb, cx), in_map(nt_x)),
            pl.BlockSpec((tb, cu), in_map(nt_u)),
            pl.BlockSpec((tb, cu), in_map(nt_u)),
        ],
        out_specs=(
            pl.BlockSpec((1, 1, 1), lambda c, j: (c, 0, 0)),
            pl.BlockSpec((1, 1, 1), lambda c, j: (c, 0, 0)),
        ),
        scratch_shapes=[pltpu.SMEM((2,), jnp.float32)],
        compiler_params=pltpu.CompilerParams(
            dimension_semantics=("parallel", "arbitrary"),
            vmem_limit_bytes=_VMEM_LIMIT_BYTES,
        ),
    )(xoutput, xtarget, uoutput, utarget)

    # Per-core partials are already normalized; just add them (<= 2 elements).
    lx = jnp.sum(lx_parts)
    lu = jnp.sum(lu_parts)
    return lx, lu


class MixMatchLoss:
    """JAX/Pallas port of the PyTorch MixMatchLoss module."""

    def __init__(self, rampup_length, lambda_u=75):
        self.rampup_length = rampup_length
        self.lambda_u = lambda_u
        self.current_lambda_u = lambda_u

    def linear_rampup(self, epoch):
        # TODO(synk): host-side scalar schedule (no tensor compute) kept in Python.
        if self.rampup_length == 0:
            return 1.0
        current = np.clip(epoch / self.rampup_length, 0.0, 1.0)
        self.current_lambda_u = float(current) * self.lambda_u

    def __call__(self, xoutput, xtarget, uoutput, utarget, epoch):
        self.linear_rampup(epoch)
        lx, lu = mixmatch_loss_pallas(xoutput, xtarget, uoutput, utarget)
        return lx, lu, self.current_lambda_u


# --------------------------------------------------------------------------- #
# Reference + self-test
# --------------------------------------------------------------------------- #
def _reference(xoutput, xtarget, uoutput, utarget):
    logp = jax.nn.log_softmax(xoutput, axis=1)
    lx = -jnp.mean(jnp.sum(logp * xtarget, axis=1))
    uprob = jax.nn.softmax(uoutput, axis=1)
    lu = jnp.mean((uprob - utarget) ** 2)
    return lx, lu


def _run_case(key, bx, bu, c, block_rows=None):
    k1, k2, k3, k4 = jax.random.split(key, 4)
    xoutput = jax.random.normal(k1, (bx, c), dtype=jnp.float32)
    uoutput = jax.random.normal(k2, (bu, c), dtype=jnp.float32)
    xtarget = jax.nn.softmax(jax.random.normal(k3, (bx, c), dtype=jnp.float32), axis=1)
    utarget = jax.nn.softmax(jax.random.normal(k4, (bu, c), dtype=jnp.float32), axis=1)

    lx, lu = mixmatch_loss_pallas(xoutput, xtarget, uoutput, utarget,
                                  block_rows=block_rows)
    jax.block_until_ready((lx, lu))

    lx_ref, lu_ref = _reference(xoutput, xtarget, uoutput, utarget)
    np.testing.assert_allclose(np.asarray(lx), np.asarray(lx_ref), rtol=1e-5, atol=1e-5)
    np.testing.assert_allclose(np.asarray(lu), np.asarray(lu_ref), rtol=1e-5, atol=1e-5)


if __name__ == "__main__":
    key = jax.random.PRNGKey(0)
    kA, kB, kC = jax.random.split(key, 3)

    # Case 1: original toy shapes (labeled batch == unlabeled batch, single tile).
    _run_case(kA, bx=8, bu=8, c=32)
    # Case 2: uneven, non-sublane-aligned batches -> exercises the row mask.
    _run_case(kB, bx=12, bu=20, c=40)
    # Case 3: force multiple tiles + the 2-way per-core split + stream clamping.
    _run_case(kC, bx=24, bu=40, c=32, block_rows=8)

    # Full module check (loss values + lambda_u ramp-up).
    k1, k2, k3, k4 = jax.random.split(kA, 4)
    Bx, Bu, C = 8, 8, 32
    xoutput = jax.random.normal(k1, (Bx, C), dtype=jnp.float32)
    uoutput = jax.random.normal(k2, (Bu, C), dtype=jnp.float32)
    xtarget = jax.nn.softmax(jax.random.normal(k3, (Bx, C), dtype=jnp.float32), axis=1)
    utarget = jax.nn.softmax(jax.random.normal(k4, (Bu, C), dtype=jnp.float32), axis=1)

    loss_fn = MixMatchLoss(rampup_length=10, lambda_u=75)
    lx, lu, lam = loss_fn(xoutput, xtarget, uoutput, utarget, epoch=3)
    jax.block_until_ready((lx, lu))

    lx_ref, lu_ref = _reference(xoutput, xtarget, uoutput, utarget)
    np.testing.assert_allclose(np.asarray(lx), np.asarray(lx_ref), rtol=1e-5, atol=1e-5)
    np.testing.assert_allclose(np.asarray(lu), np.asarray(lu_ref), rtol=1e-5, atol=1e-5)
    assert abs(lam - 0.3 * 75) < 1e-9

    print("KERNEL_OK")
</pallas_src>

<mosaic_0001>
module attributes {stable_mosaic.version = 11 : i64} {
  func.func @_mixmatch_kernel(%arg0: i32, %arg1: i32, %arg2: memref<8x32xf32, #tpu.memory_space<vmem>>, %arg3: memref<8x32xf32, #tpu.memory_space<vmem>>, %arg4: memref<8x32xf32, #tpu.memory_space<vmem>>, %arg5: memref<8x32xf32, #tpu.memory_space<vmem>>, %arg6: memref<1x1x1xf32, #tpu.memory_space<vmem>>, %arg7: memref<1x1x1xf32, #tpu.memory_space<vmem>>, %arg8: memref<2xf32, #tpu.memory_space<smem>>) attributes {dimension_semantics = [#tpu.dimension_semantics<parallel>, #tpu.dimension_semantics<arbitrary>], iteration_bounds = array<i64: 1, 1>, scalar_prefetch = 0 : i64, scratch_operands = 1 : i64, tpu.core_type = #tpu.core_type<tc>, window_params = [{transform_indices = @transform_0, window_bounds = array<i64: 8, 32>}, {transform_indices = @transform_1, window_bounds = array<i64: 8, 32>}, {transform_indices = @transform_2, window_bounds = array<i64: 8, 32>}, {transform_indices = @transform_3, window_bounds = array<i64: 8, 32>}, {transform_indices = @transform_4, window_bounds = array<i64: 1, 1, 1>}, {transform_indices = @transform_5, window_bounds = array<i64: 1, 1, 1>}]} {
    %c1_i32 = arith.constant 1 : i32
    %0 = arith.muli %arg0, %c1_i32 : i32
    %1 = arith.addi %0, %arg1 : i32
    %c8_i32 = arith.constant 8 : i32
    %2 = arith.muli %1, %c8_i32 : i32
    %3 = tpu.iota {dimensions = array<i32: 0>} : vector<8x1xi32>
    %4 = vector.broadcast %2 : i32 to vector<8x1xi32>
    %5 = arith.addi %4, %3 : vector<8x1xi32>
    %c0_i32 = arith.constant 0 : i32
    %6 = arith.cmpi eq, %arg1, %c0_i32 : i32
    %7 = arith.extui %6 : i1 to i32
    %c0_i32_0 = arith.constant 0 : i32
    %8 = arith.cmpi ne, %7, %c0_i32_0 : i32
    scf.if %8 {
      %cst = arith.constant 0.000000e+00 : f32
      %c0 = arith.constant 0 : index
      %18 = memref.load %arg8[%c0] : memref<2xf32, #tpu.memory_space<smem>>
      memref.store %cst, %arg8[%c0] : memref<2xf32, #tpu.memory_space<smem>>
      %cst_7 = arith.constant 0.000000e+00 : f32
      %c1 = arith.constant 1 : index
      %19 = memref.load %arg8[%c1] : memref<2xf32, #tpu.memory_space<smem>>
      memref.store %cst_7, %arg8[%c1] : memref<2xf32, #tpu.memory_space<smem>>
    } else {
    }
    %c1_i32_1 = arith.constant 1 : i32
    %9 = arith.cmpi slt, %1, %c1_i32_1 : i32
    %10 = arith.extui %9 : i1 to i32
    %c0_i32_2 = arith.constant 0 : i32
    %11 = arith.cmpi ne, %10, %c0_i32_2 : i32
    scf.if %11 {
      %c8_i32_7 = arith.constant 8 : i32
      %18 = vector.broadcast %c8_i32_7 : i32 to vector<8x1xi32>
      %19 = arith.cmpi slt, %5, %18 : vector<8x1xi32>
      %c0 = arith.constant 0 : index
      %c0_8 = arith.constant 0 : index
      %20 = vector.load %arg2[%c0, %c0_8] : memref<8x32xf32, #tpu.memory_space<vmem>>, vector<8x32xf32>
      %cst = arith.constant 0.000000e+00 : f32
      %21 = vector.shape_cast %19 : vector<8x1xi1> to vector<8x1xi1>
      %22 = vector.broadcast %21 : vector<8x1xi1> to vector<8x32xi1>
      %23 = vector.broadcast %cst : f32 to vector<8x32xf32>
      %24 = arith.select %22, %20, %23 : vector<8x32xi1>, vector<8x32xf32>
      %c0_9 = arith.constant 0 : index
      %c0_10 = arith.constant 0 : index
      %25 = vector.load %arg3[%c0_9, %c0_10] : memref<8x32xf32, #tpu.memory_space<vmem>>, vector<8x32xf32>
      %cst_11 = arith.constant 0.000000e+00 : f32
      %26 = vector.shape_cast %19 : vector<8x1xi1> to vector<8x1xi1>
      %27 = vector.broadcast %26 : vector<8x1xi1> to vector<8x32xi1>
      %28 = vector.broadcast %cst_11 : f32 to vector<8x32xf32>
      %29 = arith.select %27, %25, %28 : vector<8x32xi1>, vector<8x32xf32>
      %cst_12 = arith.constant dense<0xFF800000> : vector<8xf32>
      %30 = vector.multi_reduction <maximumf>, %24, %cst_12 [1] : vector<8x32xf32> to vector<8xf32>
      %31 = vector.shape_cast %30 : vector<8xf32> to vector<8x1xf32>
      %32 = vector.broadcast %31 : vector<8x1xf32> to vector<8x32xf32>
      %33 = arith.subf %24, %32 : vector<8x32xf32>
      %34 = math.exp %33 : vector<8x32xf32>
      %cst_13 = arith.constant dense<0.000000e+00> : vector<8xf32>
      %35 = vector.multi_reduction <add>, %34, %cst_13 [1] : vector<8x32xf32> to vector<8xf32>
      %36 = vector.shape_cast %35 : vector<8xf32> to vector<8x1xf32>
      %37 = math.log %36 : vector<8x1xf32>
      %c0_14 = arith.constant 0 : index
      %38 = memref.load %arg8[%c0_14] : memref<2xf32, #tpu.memory_space<smem>>
      %39 = vector.broadcast %37 : vector<8x1xf32> to vector<8x32xf32>
      %40 = arith.subf %33, %39 : vector<8x32xf32>
      %41 = arith.mulf %40, %29 : vector<8x32xf32>
      %42 = vector.shape_cast %41 : vector<8x32xf32> to vector<1x8x32xf32>
      %cst_15 = arith.constant dense<0.000000e+00> : vector<1xf32>
      %43 = vector.multi_reduction <add>, %42, %cst_15 [1, 2] : vector<1x8x32xf32> to vector<1xf32>
      %44 = vector.shape_cast %43 : vector<1xf32> to vector<1x1x1xf32>
      %45 = vector.extract %44[0, 0, 0] : f32 from vector<1x1x1xf32>
      %cst_16 = arith.constant -1.250000e-01 : f32
      %46 = arith.mulf %cst_16, %45 : f32
      %47 = arith.addf %38, %46 : f32
      %c0_17 = arith.constant 0 : index
      %48 = memref.load %arg8[%c0_17] : memref<2xf32, #tpu.memory_space<smem>>
      memref.store %47, %arg8[%c0_17] : memref<2xf32, #tpu.memory_space<smem>>
    } else {
    }
    %c1_i32_3 = arith.constant 1 : i32
    %12 = arith.cmpi slt, %1, %c1_i32_3 : i32
    %13 = arith.extui %12 : i1 to i32
    %c0_i32_4 = arith.constant 0 : i32
    %14 = arith.cmpi ne, %13, %c0_i32_4 : i32
    scf.if %14 {
      %c8_i32_7 = arith.constant 8 : i32
      %18 = vector.broadcast %c8_i32_7 : i32 to vector<8x1xi32>
      %19 = arith.cmpi slt, %5, %18 : vector<8x1xi32>
      %c0 = arith.constant 0 : index
      %c0_8 = arith.constant 0 : index
      %20 = vector.load %arg4[%c0, %c0_8] : memref<8x32xf32, #tpu.memory_space<vmem>>, vector<8x32xf32>
      %cst = arith.constant 0.000000e+00 : f32
      %21 = vector.shape_cast %19 : vector<8x1xi1> to vector<8x1xi1>
      %22 = vector.broadcast %21 : vector<8x1xi1> to vector<8x32xi1>
      %23 = vector.broadcast %cst : f32 to vector<8x32xf32>
      %24 = arith.select %22, %20, %23 : vector<8x32xi1>, vector<8x32xf32>
      %c0_9 = arith.constant 0 : index
      %c0_10 = arith.constant 0 : index
      %25 = vector.load %arg5[%c0_9, %c0_10] : memref<8x32xf32, #tpu.memory_space<vmem>>, vector<8x32xf32>
      %cst_11 = arith.constant 0.000000e+00 : f32
      %26 = vector.shape_cast %19 : vector<8x1xi1> to vector<8x1xi1>
      %27 = vector.broadcast %26 : vector<8x1xi1> to vector<8x32xi1>
      %28 = vector.broadcast %cst_11 : f32 to vector<8x32xf32>
      %29 = arith.select %27, %25, %28 : vector<8x32xi1>, vector<8x32xf32>
      %cst_12 = arith.constant dense<0xFF800000> : vector<8xf32>
      %30 = vector.multi_reduction <maximumf>, %24, %cst_12 [1] : vector<8x32xf32> to vector<8xf32>
      %31 = vector.shape_cast %30 : vector<8xf32> to vector<8x1xf32>
      %32 = vector.broadcast %31 : vector<8x1xf32> to vector<8x32xf32>
      %33 = arith.subf %24, %32 : vector<8x32xf32>
      %34 = math.exp %33 : vector<8x32xf32>
      %cst_13 = arith.constant dense<0.000000e+00> : vector<8xf32>
      %35 = vector.multi_reduction <add>, %34, %cst_13 [1] : vector<8x32xf32> to vector<8xf32>
      %36 = vector.shape_cast %35 : vector<8xf32> to vector<8x1xf32>
      %37 = tpu.reciprocal %36 : vector<8x1xf32> -> vector<8x1xf32>
      %38 = vector.broadcast %37 : vector<8x1xf32> to vector<8x32xf32>
      %39 = arith.mulf %34, %38 : vector<8x32xf32>
      %40 = arith.subf %39, %29 : vector<8x32xf32>
      %cst_14 = arith.constant 0.000000e+00 : f32
      %41 = vector.shape_cast %19 : vector<8x1xi1> to vector<8x1xi1>
      %42 = vector.broadcast %41 : vector<8x1xi1> to vector<8x32xi1>
      %43 = vector.broadcast %cst_14 : f32 to vector<8x32xf32>
      %44 = arith.select %42, %40, %43 : vector<8x32xi1>, vector<8x32xf32>
      %c1 = arith.constant 1 : index
      %45 = memref.load %arg8[%c1] : memref<2xf32, #tpu.memory_space<smem>>
      %46 = arith.mulf %44, %44 : vector<8x32xf32>
      %47 = vector.shape_cast %46 : vector<8x32xf32> to vector<1x8x32xf32>
      %cst_15 = arith.constant dense<0.000000e+00> : vector<1xf32>
      %48 = vector.multi_reduction <add>, %47, %cst_15 [1, 2] : vector<1x8x32xf32> to vector<1xf32>
      %49 = vector.shape_cast %48 : vector<1xf32> to vector<1x1x1xf32>
      %50 = vector.extract %49[0, 0, 0] : f32 from vector<1x1x1xf32>
      %cst_16 = arith.constant 3.906250e-03 : f32
      %51 = arith.mulf %cst_16, %50 : f32
      %52 = arith.addf %45, %51 : f32
      %c1_17 = arith.constant 1 : index
      %53 = memref.load %arg8[%c1_17] : memref<2xf32, #tpu.memory_space<smem>>
      memref.store %52, %arg8[%c1_17] : memref<2xf32, #tpu.memory_space<smem>>
    } else {
    }
    %c0_i32_5 = arith.constant 0 : i32
    %15 = arith.cmpi eq, %arg1, %c0_i32_5 : i32
    %16 = arith.extui %15 : i1 to i32
    %c0_i32_6 = arith.constant 0 : i32
    %17 = arith.cmpi ne, %16, %c0_i32_6 : i32
    scf.if %17 {
      %c0 = arith.constant 0 : index
      %18 = memref.load %arg8[%c0] : memref<2xf32, #tpu.memory_space<smem>>
      %19 = vector.broadcast %18 : f32 to vector<1x1x1xf32>
      %c0_7 = arith.constant 0 : index
      %c0_8 = arith.constant 0 : index
      %c0_9 = arith.constant 0 : index
      %20 = vector.load %arg6[%c0_7, %c0_8, %c0_9] : memref<1x1x1xf32, #tpu.memory_space<vmem>>, vector<1x1x1xf32>
      tpu.vector_store %arg6[%c0_7, %c0_8, %c0_9], %19 {strides = array<i32>} : memref<1x1x1xf32, #tpu.memory_space<vmem>>, vector<1x1x1xf32>,
      %c1 = arith.constant 1 : index
      %21 = memref.load %arg8[%c1] : memref<2xf32, #tpu.memory_space<smem>>
      %22 = vector.broadcast %21 : f32 to vector<1x1x1xf32>
      %c0_10 = arith.constant 0 : index
      %c0_11 = arith.constant 0 : index
      %c0_12 = arith.constant 0 : index
      %23 = vector.load %arg7[%c0_10, %c0_11, %c0_12] : memref<1x1x1xf32, #tpu.memory_space<vmem>>, vector<1x1x1xf32>
      tpu.vector_store %arg7[%c0_10, %c0_11, %c0_12], %22 {strides = array<i32>} : memref<1x1x1xf32, #tpu.memory_space<vmem>>, vector<1x1x1xf32>,
    } else {
    }
    return
  }
  func.func @transform_0(%arg0: i32, %arg1: i32) -> (i32, i32) {
    %c1_i32 = arith.constant 1 : i32
    %0 = arith.muli %arg0, %c1_i32 : i32
    %1 = arith.addi %0, %arg1 : i32
    %c0_i32 = arith.constant 0 : i32
    %2 = arith.minsi %1, %c0_i32 : i32
    %c0_i32_0 = arith.constant 0 : i32
    %c0_i32_1 = arith.constant 0 : i32
    return %2, %c0_i32_0 : i32, i32
  }
  func.func @transform_1(%arg0: i32, %arg1: i32) -> (i32, i32) {
    %c1_i32 = arith.constant 1 : i32
    %0 = arith.muli %arg0, %c1_i32 : i32
    %1 = arith.addi %0, %arg1 : i32
    %c0_i32 = arith.constant 0 : i32
    %2 = arith.minsi %1, %c0_i32 : i32
    %c0_i32_0 = arith.constant 0 : i32
    %c0_i32_1 = arith.constant 0 : i32
    return %2, %c0_i32_0 : i32, i32
  }
  func.func @transform_2(%arg0: i32, %arg1: i32) -> (i32, i32) {
    %c1_i32 = arith.constant 1 : i32
    %0 = arith.muli %arg0, %c1_i32 : i32
    %1 = arith.addi %0, %arg1 : i32
    %c0_i32 = arith.constant 0 : i32
    %2 = arith.minsi %1, %c0_i32 : i32
    %c0_i32_0 = arith.constant 0 : i32
    %c0_i32_1 = arith.constant 0 : i32
    return %2, %c0_i32_0 : i32, i32
  }
  func.func @transform_3(%arg0: i32, %arg1: i32) -> (i32, i32) {
    %c1_i32 = arith.constant 1 : i32
    %0 = arith.muli %arg0, %c1_i32 : i32
    %1 = arith.addi %0, %arg1 : i32
    %c0_i32 = arith.constant 0 : i32
    %2 = arith.minsi %1, %c0_i32 : i32
    %c0_i32_0 = arith.constant 0 : i32
    %c0_i32_1 = arith.constant 0 : i32
    return %2, %c0_i32_0 : i32, i32
  }
  func.func @transform_4(%arg0: i32, %arg1: i32) -> (i32, i32, i32) {
    %c0_i32 = arith.constant 0 : i32
    %c0_i32_0 = arith.constant 0 : i32
    %c0_i32_1 = arith.constant 0 : i32
    return %arg0, %c0_i32, %c0_i32_0 : i32, i32, i32
  }
  func.func @transform_5(%arg0: i32, %arg1: i32) -> (i32, i32, i32) {
    %c0_i32 = arith.constant 0 : i32
    %c0_i32_0 = arith.constant 0 : i32
    %c0_i32_1 = arith.constant 0 : i32
    return %arg0, %c0_i32, %c0_i32_0 : i32, i32, i32
  }
}

</mosaic_0001>

<llo_original>
// kernel: mixmatch_loss_pallas.1
$region0: #{mixmatch_loss_pallas.1}
  #allocation0 [shape = 'u32[]', space=smem, size = 0x4, offset = 0x4, fixed_abs, tag = 'smem constant byte address 0x4 - core index']
  #allocation1 [shape = 'u32[144,128]{1,0:T(1,128)}', space=vmem, size = 0x12000, scoped, tag = 'internal scratch']
  #allocation2 [shape = 'f32[2]{0:T(128)}', space=smem, size = 0x200, scoped, tag = 'scratch operand']
  %s0 = inlined_call_operand.hbm [shape: f32[8,32], index: 0, kind: input, shape index: {}]
  %s1 = inlined_call_operand.hbm [shape: f32[8,32], index: 1, kind: input, shape index: {}]
  %s2 = inlined_call_operand.hbm [shape: f32[8,32], index: 2, kind: input, shape index: {}]
  %s3 = inlined_call_operand.vmem [shape: f32[8,32], index: 3, kind: input, shape index: {}]
  %s4 = inlined_call_operand.hbm [shape: f32[1,1,1], index: 4, kind: output, shape index: {0}]
  %s5 = inlined_call_operand.hbm [shape: f32[1,1,1], index: 5, kind: output, shape index: {1}]
  %6 = xla_tuple %s4, %s5
  %s7 = sld [smem:[#allocation0]]
  $region58: #{mixmatch_loss_pallas.1} parent=0
    _
  %s9 = ssub.s32 1, %s7
  %s10 = scalar_select 0, %s9, %s7
  $region1: #{mixmatch_loss_pallas.1} parent=0
    #allocation3 [shape = 'u8[4096]{0}', space=vmem, size = 0x1000, scoped, tag = 'input window, operand 0, single buffered']
    #allocation4 [shape = 's32[1]{0}', space=sflag, size = 0x4, scoped, tag = 'scoped memory for mixmatch_loss_pallas.1']
    #allocation5 [shape = 's32[1]{0}', space=sflag, size = 0x4, scoped, tag = 'scoped memory for mixmatch_loss_pallas.1']
    #allocation6 [shape = 'u8[4096]{0}', space=vmem, size = 0x1000, scoped, tag = 'input window, operand 1, single buffered']
    #allocation7 [shape = 's32[1]{0}', space=sflag, size = 0x4, scoped, tag = 'scoped memory for mixmatch_loss_pallas.1']
    #allocation8 [shape = 'u8[4096]{0}', space=vmem, size = 0x1000, scoped, tag = 'input window, operand 2, single buffered']
    #allocation9 [shape = 'u8[512]{0}', space=vmem, size = 0x400, scoped, tag = 'output window, operand 0, single buffered']
    #allocation10 [shape = 'u8[512]{0}', space=vmem, size = 0x400, scoped, tag = 'output window, operand 1, single buffered']
    #allocation11 [shape = 's32[1]{0}', space=sflag, size = 0x4, scoped, tag = 'scoped memory for mixmatch_loss_pallas.1']
    %11 = vsyncpa [#allocation4], 0
    %12 = vsyncpa [#allocation7], 0
    %13 = vsyncpa [#allocation5], 0
    %14 = vsyncpa [#allocation11], 0
    // Predicated region
    $region2: #{mixmatch_loss_pallas.1} parent=1 // pred_check
      _
    $region3: #{mixmatch_loss_pallas.1} parent=1 // pred_check_branch
      %16 = sbr.rel (0) target = $region5
    $region4: #{mixmatch_loss_pallas.1} parent=1 // pred_region
      %s17 = sadd.s32 0, 0
      %p18 = scmp.lt.s32.totalorder %s17, 0
      %s19 = scalar_select %p18, %s17, 0
      %s21 = ssub.s32 128, 128
      %22 = vsyncadd [#allocation4], %s21
      %s23 = smul.addr %s19, 128
      %s24 = scalar_lea.hbm %s0, %s23
      %s26 = sshll.u32 [#allocation3], 4
      %s27 = int_to_ptr.vmem [resolvable:$true] %s26
      %29 = dma.hbm_to_vmem [thread:$0]  %s24, 128, %s27, [#allocation4]
    $region5: #{mixmatch_loss_pallas.1} parent=1 // pred_fallthru
      _
    // Predicated region
    $region6: #{mixmatch_loss_pallas.1} parent=1 // pred_check
      _
    $region7: #{mixmatch_loss_pallas.1} parent=1 // pred_check_branch
      %31 = sbr.rel (0) target = $region9
    $region8: #{mixmatch_loss_pallas.1} parent=1 // pred_region
      %s32 = sadd.s32 0, 0
      %p33 = scmp.lt.s32.totalorder %s32, 0
      %s34 = scalar_select %p33, %s32, 0
      %s36 = ssub.s32 128, 128
      %37 = vsyncadd [#allocation7], %s36
      %s38 = smul.addr %s34, 128
      %s39 = scalar_lea.hbm %s1, %s38
      %s41 = sshll.u32 [#allocation6], 4
      %s42 = int_to_ptr.vmem [resolvable:$true] %s41
      %44 = dma.hbm_to_vmem [thread:$0]  %s39, 128, %s42, [#allocation7]
    $region9: #{mixmatch_loss_pallas.1} parent=1 // pred_fallthru
      _
    // Predicated region
    $region10: #{mixmatch_loss_pallas.1} parent=1 // pred_check
      _
    $region11: #{mixmatch_loss_pallas.1} parent=1 // pred_check_branch
      %46 = sbr.rel (0) target = $region13
    $region12: #{mixmatch_loss_pallas.1} parent=1 // pred_region
      %s47 = sadd.s32 0, 0
      %p48 = scmp.lt.s32.totalorder %s47, 0
      %s49 = scalar_select %p48, %s47, 0
      %s51 = ssub.s32 128, 128
      %52 = vsyncadd [#allocation7], %s51
      %s53 = smul.addr %s49, 128
      %s54 = scalar_lea.hbm %s2, %s53
      %s56 = sshll.u32 [#allocation8], 4
      %s57 = int_to_ptr.vmem [resolvable:$true] %s56
      %59 = dma.hbm_to_vmem [thread:$0]  %s54, 128, %s57, [#allocation7]
    $region13: #{mixmatch_loss_pallas.1} parent=1 // pred_fallthru
      _
    // Predicated region
    $region14: #{mixmatch_loss_pallas.1} parent=1 // pred_check
      _
    $region15: #{mixmatch_loss_pallas.1} parent=1 // pred_check_branch
      %61 = sbr.rel (0) target = $region17
    $region16: #{mixmatch_loss_pallas.1} parent=1 // pred_region
      %s62 = sadd.s32 0, 0
      %p63 = scmp.lt.s32.totalorder %s62, 0
      %s64 = scalar_select %p63, %s62, 0
      %p65 = scmp.lt.s32.totalorder %s64, 0
      %s66 = scalar_select %p65, %s64, 0
      %s67 = smul.addr %s66, 8
      %s68 = scalar_lea.vmem %s3, %s67
      %s69 = sadd.s32 0, 0
      %p70 = scmp.lt.s32.totalorder %s69, 0
      %s71 = scalar_select %p70, %s69, 0
    $region17: #{mixmatch_loss_pallas.1} parent=1 // pred_fallthru
      _
    // Predicated region
    $region18: #{mixmatch_loss_pallas.1} parent=1 // pred_check
      _
    $region19: #{mixmatch_loss_pallas.1} parent=1 // pred_check_branch
      %73 = sbr.rel (0) target = $region21
    $region20: #{mixmatch_loss_pallas.1} parent=1 // pred_region
      %74 = dma.done [#allocation4], 128
    $region21: #{mixmatch_loss_pallas.1} parent=1 // pred_fallthru
      _
    // Predicated region
    $region22: #{mixmatch_loss_pallas.1} parent=1 // pred_check
      _
    $region23: #{mixmatch_loss_pallas.1} parent=1 // pred_check_branch
      %76 = sbr.rel (0) target = $region25
    $region24: #{mixmatch_loss_pallas.1} parent=1 // pred_region
      %77 = dma.done [#allocation7], 128
    $region25: #{mixmatch_loss_pallas.1} parent=1 // pred_fallthru
      _
    // Predicated region
    $region26: #{mixmatch_loss_pallas.1} parent=1 // pred_check
      _
    $region27: #{mixmatch_loss_pallas.1} parent=1 // pred_check_branch
      %79 = sbr.rel (0) target = $region29
    $region28: #{mixmatch_loss_pallas.1} parent=1 // pred_region
      %80 = dma.done [#allocation7], 128
    $region29: #{mixmatch_loss_pallas.1} parent=1 // pred_fallthru
      _
    %s81 = sadd.s32 0, 0
    %p82 = scmp.lt.s32.totalorder %s81, 0
    %s83 = scalar_select %p82, %s81, 0
    %p84 = scmp.lt.s32.totalorder %s83, 0
    %s85 = scalar_select %p84, %s83, 0
    %s86 = smul.addr %s85, 8
    %s87 = scalar_lea.vmem %s3, %s86
    %s88 = sadd.s32 0, 0
    %p89 = scmp.lt.s32.totalorder %s88, 0
    %s90 = scalar_select %p89, %s88, 0
    %s91 = sadd.s32 0, 0
    %p92 = scmp.lt.s32.totalorder %s91, 0
    %s93 = scalar_select %p92, %s91, 0
    %s94 = sadd.s32 0, 0
    %p95 = scmp.lt.s32.totalorder %s94, 0
    %s96 = scalar_select %p95, %s94, 0
    %s97 = sadd.s32 0, 0
    %p98 = scmp.lt.s32.totalorder %s97, 0
    %s99 = scalar_select %p98, %s97, 0
    %p100 = scmp.lt.s32.totalorder %s99, 0
    %s101 = scalar_select %p100, %s99, 0
    %s102 = smul.addr %s101, 8
    %s103 = scalar_lea.vmem %s3, %s102
    %s104 = sadd.s32 0, 0
    %p105 = scmp.lt.s32.totalorder %s104, 0
    %s106 = scalar_select %p105, %s104, 0
    %s107 = sadd.s32 0, 0
    %s108 = smul.u32 %s107, 8
    %v109 = vlaneseq
    %v110 = vshrl.u32 %v109, 7
    %v111 = vstv %s108
    %v112 = vadd.s32 %v111, %v110
    %p113 = scmp.eq.s32.totalorder 0, 0
    // Predicated region
    $region30: #{mixmatch_loss_pallas.1} parent=1 // pred_check
      %p114 = pneg %p113
    $region31: #{mixmatch_loss_pallas.1} parent=1 // pred_check_branch
      %116 = sbr.rel (%p114) target = $region33
    $region32: #{mixmatch_loss_pallas.1} parent=1 // pred_region
      %s117 = scalar_lea.smem [#allocation2], 0
      %118 = sst [smem:[%s117]] 0.0
      %s119 = scalar_lea.smem [#allocation2], 1
      %120 = sst [smem:[%s119]] 0.0
    $region33: #{mixmatch_loss_pallas.1} parent=1 // pred_fallthru
      _
    %p121 = scmp.lt.s32.totalorder %s107, 1
    // Predicated region
    $region34: #{mixmatch_loss_pallas.1} parent=1 // pred_check
      %p122 = pneg %p121
    $region35: #{mixmatch_loss_pallas.1} parent=1 // pred_check_branch
      %124 = sbr.rel (%p122) target = $region37
    $region36: #{mixmatch_loss_pallas.1} parent=1 // pred_region
      %vm125 = vcmp.lt.s32.totalorder %v112, 8
      %v126 = vld [vmem:[#allocation3] sm:$0xff]
      %v127 = vsel %vm125, 1, 0
      %vm128 = vcmp.eq.s32.totalorder %v127, 1
      %v129 = vsel %vm128, %v126, 0.0
      %v130 = vld [vmem:[#allocation6] sm:$0xff]
      %v131 = vsel %vm128, %v130, 0.0
      %vm132 = vcmask 261120
      %v133 = vsel %vm132, %v129, -inf
      %134 = vmax.xlane.f32.xlu0 %v133
      %v135 = vpop.xlane.xlu0 %134
      %v136 = vsub.f32 %v129, %v135
      %v137 = vmul.f32 %v136, 1.442695
      %v138 = vpow.pop %v137
      %v139 = vsel %vm132, %v138, 0.0
      %140 = vadd.xlane.f32.xlu0 %v139
      %v141 = vpop.xlane.xlu0 %140
      %v142 = vlog2.pop %v141
      %v143 = vmul.f32 %v142, 0.6931472
      %s144 = sld [smem:[#allocation2]]
      %v145 = vsub.f32 %v136, %v143
      %v146 = vmul.f32 %v145, %v131
      %v147 = vsel %vm132, %v146, 0.0
      %148 = vadd.xlane.f32.xlu0 %v147
      %v149 = vpop.xlane.xlu0 %148
      %v150 = vrot.slane %v149, 4
      %v151 = vadd.f32 %v149, %v150
      %v152 = vrot.slane %v151, 2
      %v153 = vadd.f32 %v151, %v152
      %v154 = vrot.slane %v153, 1
      %v155 = vadd.f32 %v153, %v154
      %s156 = vtos %v155
      %s157 = smul.f32 %s156, -0.125
      %s158 = sadd.f32 %s144, %s157
      %s159 = scalar_lea.smem [#allocation2], 0
      %160 = sst [smem:[%s159]] %s158
      %v161 = vld [vmem:[#allocation8] sm:$0xff]
      %v162 = vsel %vm128, %v161, 0.0
      %v163 = vld [vmem:[%s103] sm:$0xff]
      %v164 = vsel %vm128, %v163, 0.0
      %v165 = vsel %vm132, %v162, -inf
      %166 = vmax.xlane.f32.xlu0 %v165
      %v167 = vpop.xlane.xlu0 %166
      %v168 = vsub.f32 %v162, %v167
      %v169 = vmul.f32 %v168, 1.442695
      %v170 = vpow.pop %v169
      %v171 = vsel %vm132, %v170, 0.0
      %172 = vadd.xlane.f32.xlu0 %v171
      %v173 = vpop.xlane.xlu0 %172
      %v174 = vrcp.pop %v173
      %v175 = vmul.f32 %v170, %v174
      %v176 = vsub.f32 %v175, %v164
      %v177 = vsel %vm128, %v176, 0.0
      %s178 = sld [smem:[#allocation2 + $0x1]]
      %v179 = vmul.f32 %v177, %v177
      %v180 = vsel %vm132, %v179, 0.0
      %181 = vadd.xlane.f32.xlu0 %v180
      %v182 = vpop.xlane.xlu0 %181
      %v183 = vrot.slane %v182, 4
      %v184 = vadd.f32 %v182, %v183
      %v185 = vrot.slane %v184, 2
      %v186 = vadd.f32 %v184, %v185
      %v187 = vrot.slane %v186, 1
      %v188 = vadd.f32 %v186, %v187
      %s189 = vtos %v188
      %s190 = smul.f32 %s189, 0.00390625
      %s191 = sadd.f32 %s178, %s190
      %s192 = scalar_lea.smem [#allocation2], 1
      %193 = sst [smem:[%s192]] %s191
    $region37: #{mixmatch_loss_pallas.1} parent=1 // pred_fallthru
      _
    // Predicated region
    $region38: #{mixmatch_loss_pallas.1} parent=1 // pred_check
      %p194 = pneg %p113
    $region39: #{mixmatch_loss_pallas.1} parent=1 // pred_check_branch
      %196 = sbr.rel (%p194) target = $region41
    $region40: #{mixmatch_loss_pallas.1} parent=1 // pred_region
      %s197 = sld [smem:[#allocation2]]
      %v198 = vstv %s197
      %vm199 = vcmask 0
      %200 = vst.msk [vmem:[#allocation9] sm:$0x1] %vm199, %v198
      %s201 = sld [smem:[#allocation2 + $0x1]]
      %v202 = vstv %s201
      %203 = vst.msk [vmem:[#allocation10] sm:$0x1] %vm199, %v202
    $region41: #{mixmatch_loss_pallas.1} parent=1 // pred_fallthru
      _
    // Predicated region
    $region42: #{mixmatch_loss_pallas.1} parent=1 // pred_check
      _
    $region43: #{mixmatch_loss_pallas.1} parent=1 // pred_check_branch
      %205 = sbr.rel (0) target = $region45
    $region44: #{mixmatch_loss_pallas.1} parent=1 // pred_region
      %s207 = ssub.s32 16, 16
      %208 = vsyncadd [#allocation5], %s207
      %s210 = sshll.u32 [#allocation9], 4
      %s211 = int_to_ptr.vmem [resolvable:$true] %s210
      %213 = dma.vmem_to_hbm [thread:$0]  %s211, 16, %s4, [#allocation5]
    $region45: #{mixmatch_loss_pallas.1} parent=1 // pred_fallthru
      _
    // Predicated region
    $region46: #{mixmatch_loss_pallas.1} parent=1 // pred_check
      _
    $region47: #{mixmatch_loss_pallas.1} parent=1 // pred_check_branch
      %215 = sbr.rel (0) target = $region49
    $region48: #{mixmatch_loss_pallas.1} parent=1 // pred_region
      %s217 = ssub.s32 16, 16
      %218 = vsyncadd [#allocation11], %s217
      %s220 = sshll.u32 [#allocation10], 4
      %s221 = int_to_ptr.vmem [resolvable:$true] %s220
      %223 = dma.vmem_to_hbm [thread:$0]  %s221, 16, %s5, [#allocation11]
    $region49: #{mixmatch_loss_pallas.1} parent=1 // pred_fallthru
      _
    // Predicated region
    $region50: #{mixmatch_loss_pallas.1} parent=1 // pred_check
      _
    $region51: #{mixmatch_loss_pallas.1} parent=1 // pred_check_branch
      %225 = sbr.rel (0) target = $region53
    $region52: #{mixmatch_loss_pallas.1} parent=1 // pred_region
      %226 = dma.done [#allocation5], 16
    $region53: #{mixmatch_loss_pallas.1} parent=1 // pred_fallthru
      _
    // Predicated region
    $region54: #{mixmatch_loss_pallas.1} parent=1 // pred_check
      _
    $region55: #{mixmatch_loss_pallas.1} parent=1 // pred_check_branch
      %228 = sbr.rel (0) target = $region57
    $region56: #{mixmatch_loss_pallas.1} parent=1 // pred_region
      %229 = dma.done [#allocation11], 16
    $region57: #{mixmatch_loss_pallas.1} parent=1 // pred_fallthru
      _
    %230 = vsyncpa [#allocation4], 1
    %231 = vsyncpa [#allocation7], 1
    %232 = vsyncpa [#allocation5], 1
    %233 = vsyncpa [#allocation11], 1

</llo_original>
